<compile_context>
chip_gen: v7x
topology: tpu7x:2x2x1
jax: 0.10.0
libtpu: 0.0.40
codegen_flags: <defaults>
</compile_context>

<pallas_src>
import functools

import jax
import jax.numpy as jnp
from jax.experimental import pallas as pl
from jax.experimental.pallas import tpu as pltpu


def _round_up(x: int, m: int) -> int:
    return ((x + m - 1) // m) * m


def _focal_loss_kernel(logits_ref, target_ref, out_ref, *, gamma,
                       label_smoothing, n_total, tile_rows):
    # logits_ref: (TN, C) native dtype   target_ref: (TN, 1) i32
    # out_ref: (8, 128) f32
    x = logits_ref[...].astype(jnp.float32)               # (TN, C)
    tn, c = x.shape

    # --- log-softmax (numerically stable) -----------------------------------
    x_max = jnp.max(x, axis=-1, keepdims=True)            # (TN, 1)
    shifted = x - x_max
    sum_exp = jnp.sum(jnp.exp(shifted), axis=-1, keepdims=True)
    log_z = jnp.log(sum_exp)                              # (TN, 1)
    logp = shifted - log_z                                # (TN, C)

    # --- gather log p[target] via one-hot mask (no dynamic gather on TPU) ---
    tgt = target_ref[...]                                 # (TN, 1) int32
    class_ids = jax.lax.broadcasted_iota(jnp.int32, (tn, c), 1)
    onehot = class_ids == tgt                             # (TN, C) bool
    logpt_target = jnp.sum(jnp.where(onehot, logp, 0.0), axis=-1,
                           keepdims=True)                 # (TN, 1)

    # --- cross entropy with label smoothing (matches torch) -----------------
    if label_smoothing > 0.0:
        mean_neg_logp = -jnp.sum(logp, axis=-1, keepdims=True) * (1.0 / c)
        ce = (1.0 - label_smoothing) * (-logpt_target) + label_smoothing * mean_neg_logp
    else:
        ce = -logpt_target                                # (TN, 1)

    # --- focal loss ----------------------------------------------------------
    logpt = -ce                                           # (TN, 1)
    pt = jnp.exp(logpt)
    one_minus_pt = jnp.maximum(1.0 - pt, 0.0)             # clamp: no NaN if pt>1
    if gamma == 2.0:
        focal_w = one_minus_pt * one_minus_pt             # VPU multiply, no EUP
    elif gamma == 1.0:
        focal_w = one_minus_pt
    elif gamma == 0.0:
        focal_w = jnp.ones_like(one_minus_pt)
    else:
        focal_w = jnp.power(one_minus_pt, gamma)
    loss_i = -focal_w * logpt                             # (TN, 1)

    # --- mask rows past the true batch size (padded tail tile) --------------
    i = pl.program_id(0)
    row_ids = i * tile_rows + jax.lax.broadcasted_iota(jnp.int32, (tn, 1), 0)
    loss_i = jnp.where(row_ids < n_total, loss_i, 0.0)

    # --- per-tile partial sum -> own (8, 128) output tile, value at [0, 0] --
    partial = jnp.sum(loss_i)
    r = jax.lax.broadcasted_iota(jnp.int32, (8, 128), 0)
    col = jax.lax.broadcasted_iota(jnp.int32, (8, 128), 1)
    out_ref[...] = jnp.where((r == 0) & (col == 0), partial, 0.0)


def focal_loss(logits, target, *, gamma=2.0, label_smoothing=0.0,
               block_rows=1024):
    """logits: (N, C) float, target: (N,) int class indices -> scalar f32."""
    n, c = logits.shape
    target2d = target.astype(jnp.int32).reshape(n, 1)

    # Tile rows: multiple of 8, bounded so the double-buffered logits tile
    # stays inside a conservative VMEM budget on every generation (v7x has
    # the smallest VMEM at 64 MiB; scoped default 32 MiB).
    c_pad = _round_up(c, 128)                              # lane padding
    bytes_per_row = c_pad * jnp.dtype(logits.dtype).itemsize
    budget_bytes = 8 * 1024 * 1024                         # for 2x logits tile
    max_rows_by_vmem = max(8, (budget_bytes // (2 * bytes_per_row)) // 8 * 8)
    tn = min(int(block_rows), max_rows_by_vmem, _round_up(n, 8))
    tn = _round_up(tn, 8)

    n_pad = _round_up(n, tn)
    if n_pad != n:
        logits = jnp.pad(logits, ((0, n_pad - n), (0, 0)))
        target2d = jnp.pad(target2d, ((0, n_pad - n), (0, 0)))
    num_tiles = n_pad // tn

    kernel = functools.partial(
        _focal_loss_kernel,
        gamma=float(gamma),
        label_smoothing=float(label_smoothing),
        n_total=n,
        tile_rows=tn,
    )

    partials = pl.pallas_call(
        kernel,
        out_shape=jax.ShapeDtypeStruct((num_tiles * 8, 128), jnp.float32),
        grid_spec=pltpu.PrefetchScalarGridSpec(
            num_scalar_prefetch=0,
            grid=(num_tiles,),
            in_specs=[
                pl.BlockSpec((tn, c), lambda i: (i, 0)),   # logits batch tile
                pl.BlockSpec((tn, 1), lambda i: (i, 0)),   # target batch tile
            ],
            out_specs=pl.BlockSpec((8, 128), lambda i: (i, 0)),
        ),
        compiler_params=pltpu.CompilerParams(
            dimension_semantics=("parallel",),             # shard tiles across TCs
            vmem_limit_bytes=32 * 1024 * 1024,
        ),
    )(logits, target2d)

    # Tiny finalize in JAX: sum of per-tile partials, constant 1/N multiply.
    return jnp.sum(partials) * (1.0 / n)


def focal_loss_ref(logits, target, *, gamma=2.0, label_smoothing=0.0):
    """Pure-JAX reference for sanity checking."""
    logp = jax.nn.log_softmax(logits.astype(jnp.float32), axis=-1)
    n, c = logits.shape
    logpt_t = jnp.take_along_axis(logp, target.reshape(n, 1), axis=-1)[:, 0]
    if label_smoothing > 0.0:
        ce = (1.0 - label_smoothing) * (-logpt_t) + label_smoothing * (-logp.mean(-1))
    else:
        ce = -logpt_t
    logpt = -ce
    pt = jnp.exp(logpt)
    return jnp.mean(-((1.0 - pt) ** gamma) * logpt)


if __name__ == "__main__":
    key = jax.random.PRNGKey(0)

    # Case 1: module defaults (num_classes=182, gamma=2.0, ls=0.0), small batch.
    N, C = 8, 182
    k1, k2, k3, k4 = jax.random.split(key, 4)
    logits = jax.random.normal(k1, (N, C), dtype=jnp.float32) * 3.0
    target = jax.random.randint(k2, (N,), 0, C, dtype=jnp.int32)
    out = jax.block_until_ready(focal_loss(logits, target, gamma=2.0,
                                           label_smoothing=0.0))
    ref = focal_loss_ref(logits, target, gamma=2.0, label_smoothing=0.0)
    assert jnp.allclose(out, ref, rtol=1e-5, atol=1e-6), (out, ref)

    # Case 2: multi-tile grid with a ragged last tile + label smoothing
    # (exercises row masking and the parallel per-tile partial sums).
    N2 = 20
    logits2 = jax.random.normal(k3, (N2, C), dtype=jnp.float32) * 3.0
    target2 = jax.random.randint(k4, (N2,), 0, C, dtype=jnp.int32)
    out2 = jax.block_until_ready(focal_loss(logits2, target2, gamma=2.0,
                                            label_smoothing=0.1, block_rows=8))
    ref2 = focal_loss_ref(logits2, target2, gamma=2.0, label_smoothing=0.1)
    assert jnp.allclose(out2, ref2, rtol=1e-5, atol=1e-6), (out2, ref2)

    # Case 3: bf16 logits — DMA'd narrow, cast to f32 inside the kernel.
    logits3 = (jax.random.normal(k3, (N, C), dtype=jnp.float32) * 3.0
               ).astype(jnp.bfloat16)
    target3 = jax.random.randint(k4, (N,), 0, C, dtype=jnp.int32)
    out3 = jax.block_until_ready(focal_loss(logits3, target3, gamma=2.0,
                                            label_smoothing=0.0))
    ref3 = focal_loss_ref(logits3, target3, gamma=2.0, label_smoothing=0.0)
    assert jnp.allclose(out3, ref3, rtol=1e-4, atol=1e-5), (out3, ref3)

    print("KERNEL_OK")
</pallas_src>

<mosaic_0001>
module attributes {stable_mosaic.version = 11 : i64} {
  func.func @_focal_loss_kernel(%arg0: i32, %arg1: memref<8x182xf32, #tpu.memory_space<vmem>>, %arg2: memref<8x1xi32, #tpu.memory_space<vmem>>, %arg3: memref<8x128xf32, #tpu.memory_space<vmem>>) attributes {dimension_semantics = [#tpu.dimension_semantics<parallel>], iteration_bounds = array<i64: 1>, scalar_prefetch = 0 : i64, scratch_operands = 0 : i64, tpu.core_type = #tpu.core_type<tc>, window_params = [{transform_indices = @transform_0, window_bounds = array<i64: 8, 182>}, {transform_indices = @transform_1, window_bounds = array<i64: 8, 1>}, {transform_indices = @transform_2, window_bounds = array<i64: 8, 128>}]} {
    %c0 = arith.constant 0 : index
    %c0_0 = arith.constant 0 : index
    %0 = vector.load %arg1[%c0, %c0_0] : memref<8x182xf32, #tpu.memory_space<vmem>>, vector<8x182xf32>
    %cst = arith.constant dense<0xFF800000> : vector<8xf32>
    %1 = vector.multi_reduction <maximumf>, %0, %cst [1] : vector<8x182xf32> to vector<8xf32>
    %2 = vector.shape_cast %1 : vector<8xf32> to vector<8x1xf32>
    %3 = vector.broadcast %2 : vector<8x1xf32> to vector<8x182xf32>
    %4 = arith.subf %0, %3 : vector<8x182xf32>
    %5 = math.exp %4 : vector<8x182xf32>
    %cst_1 = arith.constant dense<0.000000e+00> : vector<8xf32>
    %6 = vector.multi_reduction <add>, %5, %cst_1 [1] : vector<8x182xf32> to vector<8xf32>
    %7 = vector.shape_cast %6 : vector<8xf32> to vector<8x1xf32>
    %8 = math.log %7 : vector<8x1xf32>
    %9 = vector.broadcast %8 : vector<8x1xf32> to vector<8x182xf32>
    %10 = arith.subf %4, %9 : vector<8x182xf32>
    %c0_2 = arith.constant 0 : index
    %c0_3 = arith.constant 0 : index
    %11 = vector.load %arg2[%c0_2, %c0_3] : memref<8x1xi32, #tpu.memory_space<vmem>>, vector<8x1xi32>
    %12 = tpu.iota {dimensions = array<i32: 1>} : vector<8x182xi32>
    %13 = vector.broadcast %11 : vector<8x1xi32> to vector<8x182xi32>
    %14 = arith.cmpi eq, %12, %13 : vector<8x182xi32>
    %cst_4 = arith.constant 0.000000e+00 : f32
    %15 = vector.broadcast %cst_4 : f32 to vector<8x182xf32>
    %16 = arith.select %14, %10, %15 : vector<8x182xi1>, vector<8x182xf32>
    %cst_5 = arith.constant dense<0.000000e+00> : vector<8xf32>
    %17 = vector.multi_reduction <add>, %16, %cst_5 [1] : vector<8x182xf32> to vector<8xf32>
    %18 = vector.shape_cast %17 : vector<8xf32> to vector<8x1xf32>
    %cst_6 = arith.constant 0.000000e+00 : f32
    %19 = vector.broadcast %cst_6 : f32 to vector<8x1xf32>
    %20 = arith.subf %19, %18 : vector<8x1xf32>
    %cst_7 = arith.constant 0.000000e+00 : f32
    %21 = vector.broadcast %cst_7 : f32 to vector<8x1xf32>
    %22 = arith.subf %21, %20 : vector<8x1xf32>
    %23 = math.exp %22 : vector<8x1xf32>
    %cst_8 = arith.constant 1.000000e+00 : f32
    %24 = vector.broadcast %cst_8 : f32 to vector<8x1xf32>
    %25 = arith.subf %24, %23 : vector<8x1xf32>
    %cst_9 = arith.constant 0.000000e+00 : f32
    %26 = vector.broadcast %cst_9 : f32 to vector<8x1xf32>
    %27 = arith.maximumf %25, %26 : vector<8x1xf32>
    %28 = arith.mulf %27, %27 : vector<8x1xf32>
    %cst_10 = arith.constant 0.000000e+00 : f32
    %29 = vector.broadcast %cst_10 : f32 to vector<8x1xf32>
    %30 = arith.subf %29, %28 : vector<8x1xf32>
    %31 = arith.mulf %30, %22 : vector<8x1xf32>
    %c8_i32 = arith.constant 8 : i32
    %32 = arith.muli %arg0, %c8_i32 : i32
    %33 = tpu.iota {dimensions = array<i32: 0>} : vector<8x1xi32>
    %34 = vector.broadcast %32 : i32 to vector<8x1xi32>
    %35 = arith.addi %34, %33 : vector<8x1xi32>
    %c8_i32_11 = arith.constant 8 : i32
    %36 = vector.broadcast %c8_i32_11 : i32 to vector<8x1xi32>
    %37 = arith.cmpi slt, %35, %36 : vector<8x1xi32>
    %cst_12 = arith.constant 0.000000e+00 : f32
    %38 = vector.broadcast %cst_12 : f32 to vector<8x1xf32>
    %39 = arith.select %37, %31, %38 : vector<8x1xi1>, vector<8x1xf32>
    %40 = vector.shape_cast %39 : vector<8x1xf32> to vector<1x8x1xf32>
    %cst_13 = arith.constant dense<0.000000e+00> : vector<1xf32>
    %41 = vector.multi_reduction <add>, %40, %cst_13 [1, 2] : vector<1x8x1xf32> to vector<1xf32>
    %42 = vector.shape_cast %41 : vector<1xf32> to vector<1x1x1xf32>
    %43 = vector.extract %42[0, 0, 0] : f32 from vector<1x1x1xf32>
    %44 = tpu.iota {dimensions = array<i32: 0>} : vector<8x128xi32>
    %45 = tpu.iota {dimensions = array<i32: 1>} : vector<8x128xi32>
    %c0_i32 = arith.constant 0 : i32
    %46 = vector.broadcast %c0_i32 : i32 to vector<8x128xi32>
    %47 = arith.cmpi eq, %44, %46 : vector<8x128xi32>
    %c0_i32_14 = arith.constant 0 : i32
    %48 = vector.broadcast %c0_i32_14 : i32 to vector<8x128xi32>
    %49 = arith.cmpi eq, %45, %48 : vector<8x128xi32>
    %50 = arith.andi %47, %49 : vector<8x128xi1>
    %cst_15 = arith.constant 0.000000e+00 : f32
    %51 = vector.broadcast %43 : f32 to vector<8x128xf32>
    %52 = vector.broadcast %cst_15 : f32 to vector<8x128xf32>
    %53 = arith.select %50, %51, %52 : vector<8x128xi1>, vector<8x128xf32>
    %c0_16 = arith.constant 0 : index
    %c0_17 = arith.constant 0 : index
    %54 = vector.load %arg3[%c0_16, %c0_17] : memref<8x128xf32, #tpu.memory_space<vmem>>, vector<8x128xf32>
    tpu.vector_store %arg3[%c0_16, %c0_17], %53 {strides = array<i32>} : memref<8x128xf32, #tpu.memory_space<vmem>>, vector<8x128xf32>,
    return
  }
  func.func @transform_0(%arg0: i32) -> (i32, i32) {
    %c0_i32 = arith.constant 0 : i32
    %c0_i32_0 = arith.constant 0 : i32
    return %arg0, %c0_i32 : i32, i32
  }
  func.func @transform_1(%arg0: i32) -> (i32, i32) {
    %c0_i32 = arith.constant 0 : i32
    %c0_i32_0 = arith.constant 0 : i32
    return %arg0, %c0_i32 : i32, i32
  }
  func.func @transform_2(%arg0: i32) -> (i32, i32) {
    %c0_i32 = arith.constant 0 : i32
    %c0_i32_0 = arith.constant 0 : i32
    return %arg0, %c0_i32 : i32, i32
  }
}

</mosaic_0001>

<llo_original>
// kernel: tpu_custom_call.1
$region0: #{tpu_custom_call.1}
  #allocation0 [shape = 'u32[]', space=smem, size = 0x4, offset = 0x4, fixed_abs, tag = 'smem constant byte address 0x4 - core index']
  #allocation1 [shape = 'u32[144,128]{1,0:T(1,128)}', space=vmem, size = 0x12000, scoped, tag = 'internal scratch']
  %s0 = inlined_call_operand.hbm [shape: f32[8,182], index: 0, kind: input, shape index: {}]
  %s1 = inlined_call_operand.vmem [shape: s32[8,1], index: 1, kind: input, shape index: {}]
  %s2 = inlined_call_operand.hbm [shape: f32[8,128], index: 2, kind: output, shape index: {}]
  %s3 = sld [smem:[#allocation0]]
  $region22: #{tpu_custom_call.1} parent=0
    _
  %s5 = ssub.s32 1, %s3
  %s6 = scalar_select 0, %s5, %s3
  $region1: #{tpu_custom_call.1} parent=0
    #allocation2 [shape = 'u8[8192]{0}', space=vmem, size = 0x2000, scoped, tag = 'input window, operand 0, single buffered']
    #allocation3 [shape = 's32[1]{0}', space=sflag, size = 0x4, scoped, tag = 'scoped memory for tpu_custom_call.1']
    #allocation4 [shape = 's32[1]{0}', space=sflag, size = 0x4, scoped, tag = 'scoped memory for tpu_custom_call.1']
    #allocation5 [shape = 'u8[4096]{0}', space=vmem, size = 0x1000, scoped, tag = 'output window, operand 0, single buffered']
    %7 = vsyncpa [#allocation3], 0
    %8 = vsyncpa [#allocation4], 0
    // Predicated region
    $region2: #{tpu_custom_call.1} parent=1 // pred_check
      _
    $region3: #{tpu_custom_call.1} parent=1 // pred_check_branch
      %10 = sbr.rel (0) target = $region5
    $region4: #{tpu_custom_call.1} parent=1 // pred_region
      %s12 = ssub.s32 256, 256
      %13 = vsyncadd [#allocation3], %s12
      %s15 = sshll.u32 [#allocation2], 4
      %s16 = int_to_ptr.vmem [resolvable:$true] %s15
      %18 = dma.hbm_to_vmem [thread:$0]  %s0, 256, %s16, [#allocation3]
    $region5: #{tpu_custom_call.1} parent=1 // pred_fallthru
      _
    // Predicated region
    $region6: #{tpu_custom_call.1} parent=1 // pred_check
      _
    $region7: #{tpu_custom_call.1} parent=1 // pred_check_branch
      %20 = sbr.rel (0) target = $region9
    $region8: #{tpu_custom_call.1} parent=1 // pred_region
      _
    $region9: #{tpu_custom_call.1} parent=1 // pred_fallthru
      _
    // Predicated region
    $region10: #{tpu_custom_call.1} parent=1 // pred_check
      _
    $region11: #{tpu_custom_call.1} parent=1 // pred_check_branch
      %22 = sbr.rel (0) target = $region13
    $region12: #{tpu_custom_call.1} parent=1 // pred_region
      %23 = dma.done [#allocation3], 256
    $region13: #{tpu_custom_call.1} parent=1 // pred_fallthru
      _
    %v24 = vld [vmem:[#allocation2] sm:$0xff]
    %v25 = vld [vmem:[#allocation2 + $0x8] sm:$0xff]
    %vm26 = vcmask 441344
    %v27 = vsel %vm26, %v25, -inf
    %v28 = vmax.f32 %v24, %v27
    %29 = vmax.xlane.f32.xlu0 %v28
    %v30 = vpop.xlane.xlu0 %29
    %v31 = vsub.f32 %v24, %v30
    %v32 = vsub.f32 %v25, %v30
    %v33 = vmul.f32 %v31, 1.442695
    %v34 = vpow.pop %v33
    %v35 = vmul.f32 %v32, 1.442695
    %v36 = vpow.pop %v35
    %v37 = vsel %vm26, %v36, 0.0
    %v38 = vadd.f32 %v34, %v37
    %39 = vadd.xlane.f32.xlu0 %v38
    %v40 = vpop.xlane.xlu0 %39
    %v41 = vlog2.pop %v40
    %v42 = vmul.f32 %v41, 0.6931472
    %v43 = vsub.f32 %v31, %v42
    %v44 = vsub.f32 %v32, %v42
    %v45 = vld [vmem:[%s1] sm:$0xff]
    %v46 = vlaneseq
    %v47 = vand.u32 %v46, 127
    %v48 = vadd.s32 %v47, 128
    %49 = vset.pattern.permute.xlu0 0
    %50 = vperm.xlu0 %49, %v45
    %v51 = vpop.permute.xlu0 %50
    %vm52 = vcmp.eq.s32.totalorder %v47, %v51
    %vm53 = vcmp.eq.s32.totalorder %v48, %v51
    %v54 = vsel %vm52, %v43, 0.0
    %v55 = vsel %vm53, %v44, 0.0
    %v56 = vsel %vm26, %v55, 0.0
    %v57 = vadd.f32 %v54, %v56
    %58 = vadd.xlane.f32.xlu0 %v57
    %v59 = vpop.xlane.xlu0 %58
    %v60 = vsub.f32 0.0, %v59
    %v61 = vsub.f32 0.0, %v60
    %v62 = vmul.f32 %v61, 1.442695
    %v63 = vpow.pop %v62
    %v64 = vsub.f32 1.0, %v63
    %v65 = vmax.f32 %v64, 0.0
    %v66 = vmul.f32 %v65, %v65
    %v67 = vsub.f32 0.0, %v66
    %v68 = vmul.f32 %v67, %v61
    %s69 = smul.u32 0, 8
    %v70 = vlaneseq
    %v71 = vshrl.u32 %v70, 7
    %v72 = vstv %s69
    %v73 = vadd.s32 %v72, %v71
    %vm74 = vcmp.lt.s32.totalorder %v73, 8
    %v75 = vsel %vm74, %v68, 0.0
    %vm76 = vcmask 7168
    %v77 = vsel %vm76, %v75, 0.0
    %78 = vadd.xlane.f32.xlu0 %v77
    %v79 = vpop.xlane.xlu0 %78
    %v80 = vrot.slane %v79, 4
    %v81 = vadd.f32 %v79, %v80
    %v82 = vrot.slane %v81, 2
    %v83 = vadd.f32 %v81, %v82
    %v84 = vrot.slane %v83, 1
    %v85 = vadd.f32 %v83, %v84
    %s86 = vtos %v85
    %vm87 = vcmp.eq.s32.totalorder %v71, 0
    %vm88 = vcmp.eq.s32.totalorder %v47, 0
    %vm89 = vmand %vm87, %vm88
    %v90 = vstv %s86
    %v91 = vsel %vm89, %v90, 0.0
    %92 = vst [vmem:[#allocation5] sm:$0xff] %v91
    // Predicated region
    $region14: #{tpu_custom_call.1} parent=1 // pred_check
      _
    $region15: #{tpu_custom_call.1} parent=1 // pred_check_branch
      %94 = sbr.rel (0) target = $region17
    $region16: #{tpu_custom_call.1} parent=1 // pred_region
      %s96 = ssub.s32 128, 128
      %97 = vsyncadd [#allocation4], %s96
      %s99 = sshll.u32 [#allocation5], 4
      %s100 = int_to_ptr.vmem [resolvable:$true] %s99
      %102 = dma.vmem_to_hbm [thread:$0]  %s100, 128, %s2, [#allocation4]
    $region17: #{tpu_custom_call.1} parent=1 // pred_fallthru
      _
    // Predicated region
    $region18: #{tpu_custom_call.1} parent=1 // pred_check
      _
    $region19: #{tpu_custom_call.1} parent=1 // pred_check_branch
      %104 = sbr.rel (0) target = $region21
    $region20: #{tpu_custom_call.1} parent=1 // pred_region
      %105 = dma.done [#allocation4], 128
    $region21: #{tpu_custom_call.1} parent=1 // pred_fallthru
      _
    %106 = vsyncpa [#allocation3], 1
    %107 = vsyncpa [#allocation4], 1

</llo_original>
